<compile_context>
chip_gen: v5e
topology: v5e:2x2
jax: 0.10.0
libtpu: 0.0.40
codegen_flags: <defaults>
</compile_context>

<pallas_src>
import jax
import jax.numpy as jnp
from jax.experimental import pallas as pl
from jax.experimental.pallas import tpu as pltpu


def policy_kernel(x_ref, w1_ref, b1_ref, w2_ref, b2_ref, w3_ref, b3_ref, o_ref):
    # fc1 + relu  (bf16 operands on the MXU, fp32 accumulation)
    x = x_ref[...].astype(jnp.bfloat16)
    h1 = jnp.dot(x, w1_ref[...], preferred_element_type=jnp.float32) + b1_ref[...]
    h1 = jnp.maximum(h1, 0.0).astype(jnp.bfloat16)
    # fc2 + relu
    h2 = jnp.dot(h1, w2_ref[...], preferred_element_type=jnp.float32) + b2_ref[...]
    h2 = jnp.maximum(h2, 0.0).astype(jnp.bfloat16)
    # fc3
    logits = jnp.dot(h2, w3_ref[...], preferred_element_type=jnp.float32) + b3_ref[...]
    # softmax over dim=1 (actions), numerically stable
    m = jnp.max(logits, axis=1, keepdims=True)
    e = jnp.exp(logits - m)
    denom = jnp.sum(e, axis=1, keepdims=True)
    o_ref[...] = (e * pl.reciprocal(denom, approx=False)).astype(o_ref.dtype)


def _round_up(a, m):
    return (a + m - 1) // m * m


def stochastic_policy_forward(x, params, tile_b=256):
    """x: [B, n_states] float32 -> action probabilities [B, n_actions] float32."""
    w1, b1, w2, b2, w3, b3 = params
    B, n_states = x.shape
    H = w1.shape[1]
    n_actions = w3.shape[1]

    # Batch tile: multiple of 8 sublanes, capped at tile_b. Pad batch so the
    # grid divides evenly; padded rows are sliced off at the end.
    tb = min(tile_b, _round_up(B, 8))
    b_pad = _round_up(B, tb)
    if b_pad != B:
        x = jnp.pad(x, ((0, b_pad - B), (0, 0)))
    grid = (b_pad // tb,)

    # Weights / biases: whole-array blocks, same block for every grid step ->
    # DMA'd once per pallas_call and kept VMEM-resident across batch tiles.
    w_spec = lambda shape: pl.BlockSpec(shape, lambda i: (0, 0))

    out = pl.pallas_call(
        policy_kernel,
        out_shape=jax.ShapeDtypeStruct((b_pad, n_actions), jnp.float32),
        grid_spec=pltpu.PrefetchScalarGridSpec(
            num_scalar_prefetch=0,
            grid=grid,
            in_specs=[
                pl.BlockSpec((tb, n_states), lambda i: (i, 0)),   # x tile
                w_spec((n_states, H)),                            # w1 (bf16)
                w_spec((1, H)),                                   # b1 (f32)
                w_spec((H, H)),                                   # w2 (bf16)
                w_spec((1, H)),                                   # b2 (f32)
                w_spec((H, n_actions)),                           # w3 (bf16)
                w_spec((1, n_actions)),                           # b3 (f32)
            ],
            out_specs=pl.BlockSpec((tb, n_actions), lambda i: (i, 0)),
        ),
        compiler_params=pltpu.CompilerParams(
            dimension_semantics=("parallel",),   # v7x: 2 TCs split the batch
            vmem_limit_bytes=8 << 20,
        ),
    )(x, w1, b1, w2, b2, w3, b3)

    return out[:B]


def init_params(key, n_states, n_actions, hidden=512):
    """Init mimicking torch.nn.Linear default U[-1/sqrt(fan_in), +1/sqrt(fan_in)].

    Weights are stored transposed relative to PyTorch ([in, out]) and cast to
    bfloat16 (MXU-native narrow type on all generations); biases stay fp32 and
    2D ([1, out]) for clean VMEM layout / broadcasting onto the fp32 accumulator.
    """
    keys = jax.random.split(key, 6)

    def linear(kw, kb, fan_in, fan_out):
        bound = 1.0 / jnp.sqrt(jnp.float32(fan_in))
        w = jax.random.uniform(kw, (fan_in, fan_out), jnp.float32, -bound, bound)
        b = jax.random.uniform(kb, (1, fan_out), jnp.float32, -bound, bound)
        return w.astype(jnp.bfloat16), b

    w1, b1 = linear(keys[0], keys[1], n_states, hidden)
    w2, b2 = linear(keys[2], keys[3], hidden, hidden)
    w3, b3 = linear(keys[4], keys[5], hidden, n_actions)
    return (w1, b1, w2, b2, w3, b3)


def _reference(x, params):
    """Plain-JAX reference with the same bf16-weight / fp32-accum math."""
    w1, b1, w2, b2, w3, b3 = params
    h1 = jnp.maximum(
        jnp.dot(x.astype(jnp.bfloat16), w1, preferred_element_type=jnp.float32) + b1, 0.0)
    h2 = jnp.maximum(
        jnp.dot(h1.astype(jnp.bfloat16), w2, preferred_element_type=jnp.float32) + b2, 0.0)
    logits = jnp.dot(h2.astype(jnp.bfloat16), w3, preferred_element_type=jnp.float32) + b3
    return jax.nn.softmax(logits, axis=1)


if __name__ == "__main__":
    # LunarLander-v2: 8-dim observation, 4 discrete actions.
    n_states, n_actions = 8, 4

    key = jax.random.PRNGKey(0)
    k_params, k_x1, k_x2 = jax.random.split(key, 3)
    params = init_params(k_params, n_states, n_actions)

    fwd = jax.jit(stochastic_policy_forward)

    # Small batch (single-tile path).
    x_small = jax.random.normal(k_x1, (8, n_states), jnp.float32)
    probs_small = jax.block_until_ready(fwd(x_small, params))
    ref_small = _reference(x_small, params)
    assert probs_small.shape == (8, n_actions)
    assert jnp.allclose(probs_small, ref_small, atol=1e-4, rtol=1e-4)
    assert jnp.allclose(jnp.sum(probs_small, axis=1), 1.0, atol=1e-5)

    # Larger, non-multiple-of-tile batch (exercises padding + multi-step grid,
    # weights VMEM-resident across tiles).
    x_big = jax.random.normal(k_x2, (300, n_states), jnp.float32)
    probs_big = jax.block_until_ready(fwd(x_big, params))
    ref_big = _reference(x_big, params)
    assert probs_big.shape == (300, n_actions)
    assert jnp.allclose(probs_big, ref_big, atol=1e-4, rtol=1e-4)
    assert jnp.allclose(jnp.sum(probs_big, axis=1), 1.0, atol=1e-5)

    print("KERNEL_OK")
</pallas_src>

<mosaic_0001>
module attributes {stable_mosaic.version = 11 : i64} {
  func.func @policy_kernel(%arg0: i32, %arg1: memref<8x8xf32, #tpu.memory_space<vmem>>, %arg2: memref<8x512xbf16, #tpu.memory_space<vmem>>, %arg3: memref<1x512xf32, #tpu.memory_space<vmem>>, %arg4: memref<512x512xbf16, #tpu.memory_space<vmem>>, %arg5: memref<1x512xf32, #tpu.memory_space<vmem>>, %arg6: memref<512x4xbf16, #tpu.memory_space<vmem>>, %arg7: memref<1x4xf32, #tpu.memory_space<vmem>>, %arg8: memref<8x4xf32, #tpu.memory_space<vmem>>) attributes {dimension_semantics = [#tpu.dimension_semantics<parallel>], iteration_bounds = array<i64: 1>, scalar_prefetch = 0 : i64, scratch_operands = 0 : i64, tpu.core_type = #tpu.core_type<tc>, window_params = [{transform_indices = @transform_0, window_bounds = array<i64: 8, 8>}, {pipeline_mode = #tpu.pipeline_mode<synchronous>, transform_indices = @transform_1, window_bounds = array<i64: 8, 512>}, {pipeline_mode = #tpu.pipeline_mode<synchronous>, transform_indices = @transform_2, window_bounds = array<i64: 1, 512>}, {pipeline_mode = #tpu.pipeline_mode<synchronous>, transform_indices = @transform_3, window_bounds = array<i64: 512, 512>}, {pipeline_mode = #tpu.pipeline_mode<synchronous>, transform_indices = @transform_4, window_bounds = array<i64: 1, 512>}, {pipeline_mode = #tpu.pipeline_mode<synchronous>, transform_indices = @transform_5, window_bounds = array<i64: 512, 4>}, {pipeline_mode = #tpu.pipeline_mode<synchronous>, transform_indices = @transform_6, window_bounds = array<i64: 1, 4>}, {transform_indices = @transform_7, window_bounds = array<i64: 8, 4>}]} {
    %c0 = arith.constant 0 : index
    %c0_0 = arith.constant 0 : index
    %0 = vector.load %arg1[%c0, %c0_0] : memref<8x8xf32, #tpu.memory_space<vmem>>, vector<8x8xf32>
    %1 = arith.truncf %0 : vector<8x8xf32> to vector<8x8xbf16>
    %c0_1 = arith.constant 0 : index
    %c0_2 = arith.constant 0 : index
    %2 = vector.load %arg2[%c0_1, %c0_2] : memref<8x512xbf16, #tpu.memory_space<vmem>>, vector<8x512xbf16>
    %cst = arith.constant dense<0.000000e+00> : vector<8x512xf32>
    %3 = tpu.matmul %1, %2, %cst {dimension_numbers = #tpu.dot_dimension_numbers<[1], [0], [0], [1], [0, 0, 1, 1], [], []>} : vector<8x8xbf16>, vector<8x512xbf16>, vector<8x512xf32> -> vector<8x512xf32>
    %c0_3 = arith.constant 0 : index
    %c0_4 = arith.constant 0 : index
    %4 = vector.load %arg3[%c0_3, %c0_4] : memref<1x512xf32, #tpu.memory_space<vmem>>, vector<1x512xf32>
    %5 = vector.broadcast %4 : vector<1x512xf32> to vector<8x512xf32>
    %6 = arith.addf %3, %5 : vector<8x512xf32>
    %cst_5 = arith.constant 0.000000e+00 : f32
    %7 = vector.broadcast %cst_5 : f32 to vector<8x512xf32>
    %8 = arith.maximumf %6, %7 : vector<8x512xf32>
    %9 = arith.truncf %8 : vector<8x512xf32> to vector<8x512xbf16>
    %c0_6 = arith.constant 0 : index
    %c0_7 = arith.constant 0 : index
    %10 = vector.load %arg4[%c0_6, %c0_7] : memref<512x512xbf16, #tpu.memory_space<vmem>>, vector<512x512xbf16>
    %cst_8 = arith.constant dense<0.000000e+00> : vector<8x512xf32>
    %11 = tpu.matmul %9, %10, %cst_8 {dimension_numbers = #tpu.dot_dimension_numbers<[1], [0], [0], [1], [0, 0, 1, 1], [], []>} : vector<8x512xbf16>, vector<512x512xbf16>, vector<8x512xf32> -> vector<8x512xf32>
    %c0_9 = arith.constant 0 : index
    %c0_10 = arith.constant 0 : index
    %12 = vector.load %arg5[%c0_9, %c0_10] : memref<1x512xf32, #tpu.memory_space<vmem>>, vector<1x512xf32>
    %13 = vector.broadcast %12 : vector<1x512xf32> to vector<8x512xf32>
    %14 = arith.addf %11, %13 : vector<8x512xf32>
    %cst_11 = arith.constant 0.000000e+00 : f32
    %15 = vector.broadcast %cst_11 : f32 to vector<8x512xf32>
    %16 = arith.maximumf %14, %15 : vector<8x512xf32>
    %17 = arith.truncf %16 : vector<8x512xf32> to vector<8x512xbf16>
    %c0_12 = arith.constant 0 : index
    %c0_13 = arith.constant 0 : index
    %18 = vector.load %arg6[%c0_12, %c0_13] : memref<512x4xbf16, #tpu.memory_space<vmem>>, vector<512x4xbf16>
    %cst_14 = arith.constant dense<0.000000e+00> : vector<8x4xf32>
    %19 = tpu.matmul %17, %18, %cst_14 {dimension_numbers = #tpu.dot_dimension_numbers<[1], [0], [0], [1], [0, 0, 1, 1], [], []>} : vector<8x512xbf16>, vector<512x4xbf16>, vector<8x4xf32> -> vector<8x4xf32>
    %c0_15 = arith.constant 0 : index
    %c0_16 = arith.constant 0 : index
    %20 = vector.load %arg7[%c0_15, %c0_16] : memref<1x4xf32, #tpu.memory_space<vmem>>, vector<1x4xf32>
    %21 = vector.broadcast %20 : vector<1x4xf32> to vector<8x4xf32>
    %22 = arith.addf %19, %21 : vector<8x4xf32>
    %cst_17 = arith.constant dense<0xFF800000> : vector<8xf32>
    %23 = vector.multi_reduction <maximumf>, %22, %cst_17 [1] : vector<8x4xf32> to vector<8xf32>
    %24 = vector.shape_cast %23 : vector<8xf32> to vector<8x1xf32>
    %25 = vector.broadcast %24 : vector<8x1xf32> to vector<8x4xf32>
    %26 = arith.subf %22, %25 : vector<8x4xf32>
    %27 = math.exp %26 : vector<8x4xf32>
    %cst_18 = arith.constant dense<0.000000e+00> : vector<8xf32>
    %28 = vector.multi_reduction <add>, %27, %cst_18 [1] : vector<8x4xf32> to vector<8xf32>
    %29 = vector.shape_cast %28 : vector<8xf32> to vector<8x1xf32>
    %30 = tpu.reciprocal %29 : vector<8x1xf32> -> vector<8x1xf32>
    %31 = vector.broadcast %30 : vector<8x1xf32> to vector<8x4xf32>
    %32 = arith.mulf %27, %31 : vector<8x4xf32>
    %c0_19 = arith.constant 0 : index
    %c0_20 = arith.constant 0 : index
    %33 = vector.load %arg8[%c0_19, %c0_20] : memref<8x4xf32, #tpu.memory_space<vmem>>, vector<8x4xf32>
    tpu.vector_store %arg8[%c0_19, %c0_20], %32 {strides = array<i32>} : memref<8x4xf32, #tpu.memory_space<vmem>>, vector<8x4xf32>,
    return
  }
  func.func @transform_0(%arg0: i32) -> (i32, i32) {
    %c0_i32 = arith.constant 0 : i32
    %c0_i32_0 = arith.constant 0 : i32
    return %arg0, %c0_i32 : i32, i32
  }
  func.func @transform_1(%arg0: i32) -> (i32, i32) {
    %c0_i32 = arith.constant 0 : i32
    %c0_i32_0 = arith.constant 0 : i32
    %c0_i32_1 = arith.constant 0 : i32
    return %c0_i32, %c0_i32_0 : i32, i32
  }
  func.func @transform_2(%arg0: i32) -> (i32, i32) {
    %c0_i32 = arith.constant 0 : i32
    %c0_i32_0 = arith.constant 0 : i32
    %c0_i32_1 = arith.constant 0 : i32
    return %c0_i32, %c0_i32_0 : i32, i32
  }
  func.func @transform_3(%arg0: i32) -> (i32, i32) {
    %c0_i32 = arith.constant 0 : i32
    %c0_i32_0 = arith.constant 0 : i32
    %c0_i32_1 = arith.constant 0 : i32
    return %c0_i32, %c0_i32_0 : i32, i32
  }
  func.func @transform_4(%arg0: i32) -> (i32, i32) {
    %c0_i32 = arith.constant 0 : i32
    %c0_i32_0 = arith.constant 0 : i32
    %c0_i32_1 = arith.constant 0 : i32
    return %c0_i32, %c0_i32_0 : i32, i32
  }
  func.func @transform_5(%arg0: i32) -> (i32, i32) {
    %c0_i32 = arith.constant 0 : i32
    %c0_i32_0 = arith.constant 0 : i32
    %c0_i32_1 = arith.constant 0 : i32
    return %c0_i32, %c0_i32_0 : i32, i32
  }
  func.func @transform_6(%arg0: i32) -> (i32, i32) {
    %c0_i32 = arith.constant 0 : i32
    %c0_i32_0 = arith.constant 0 : i32
    %c0_i32_1 = arith.constant 0 : i32
    return %c0_i32, %c0_i32_0 : i32, i32
  }
  func.func @transform_7(%arg0: i32) -> (i32, i32) {
    %c0_i32 = arith.constant 0 : i32
    %c0_i32_0 = arith.constant 0 : i32
    return %arg0, %c0_i32 : i32, i32
  }
}

</mosaic_0001>

<llo_original>
// kernel: stochastic_policy_forward.1
$region0: #{stochastic_policy_forward.1}
  #allocation0 [shape = 'u32[]', space=smem, size = 0x4, offset = 0x4, fixed_abs, tag = 'smem constant byte address 0x4 - core index']
  #allocation1 [shape = 'u32[72,128]{1,0:T(1,128)}', space=vmem, size = 0x9000, scoped, tag = 'internal scratch']
  %s0 = inlined_call_operand.vmem [shape: f32[8,8], index: 0, kind: input, shape index: {}]
  %s1 = inlined_call_operand.vmem [shape: bf16[8,512], index: 1, kind: input, shape index: {}]
  %s2 = inlined_call_operand.vmem [shape: f32[1,512], index: 2, kind: input, shape index: {}]
  %s3 = inlined_call_operand.hbm [shape: bf16[512,512], index: 3, kind: input, shape index: {}]
  %s4 = inlined_call_operand.vmem [shape: f32[1,512], index: 4, kind: input, shape index: {}]
  %s5 = inlined_call_operand.vmem [shape: bf16[512,4], index: 5, kind: input, shape index: {}]
  %s6 = inlined_call_operand.vmem [shape: f32[1,4], index: 6, kind: input, shape index: {}]
  %s7 = inlined_call_operand.vmem [shape: f32[8,4], index: 7, kind: output, shape index: {}]
  %s8 = sld [smem:[#allocation0]]
  $region42: #{stochastic_policy_forward.1} parent=0
    _
  %s10 = ssub.s32 1, %s8
  %s11 = scalar_select 0, %s10, %s8
  $region1: #{stochastic_policy_forward.1} parent=0
    #allocation2 [shape = 'u8[524288]{0}', space=vmem, size = 0x80000, scoped, tag = 'input window, operand 3, single buffered']
    #allocation3 [shape = 's32[1]{0}', space=sflag, size = 0x4, scoped, tag = 'scoped memory for stochastic_policy_forward.1']
    %12 = vsyncpa [#allocation3], 0
    // Predicated region
    $region2: #{stochastic_policy_forward.1} parent=1 // pred_check
      _
    $region3: #{stochastic_policy_forward.1} parent=1 // pred_check_branch
      %14 = sbr.rel (0) target = $region5
    $region4: #{stochastic_policy_forward.1} parent=1 // pred_region
      _
    $region5: #{stochastic_policy_forward.1} parent=1 // pred_fallthru
      _
    // Predicated region
    $region6: #{stochastic_policy_forward.1} parent=1 // pred_check
      _
    $region7: #{stochastic_policy_forward.1} parent=1 // pred_check_branch
      %16 = sbr.rel (0) target = $region9
    $region8: #{stochastic_policy_forward.1} parent=1 // pred_region
      _
    $region9: #{stochastic_policy_forward.1} parent=1 // pred_fallthru
      _
    // Predicated region
    $region10: #{stochastic_policy_forward.1} parent=1 // pred_check
      _
    $region11: #{stochastic_policy_forward.1} parent=1 // pred_check_branch
      %18 = sbr.rel (0) target = $region13
    $region12: #{stochastic_policy_forward.1} parent=1 // pred_region
      _
    $region13: #{stochastic_policy_forward.1} parent=1 // pred_fallthru
      _
    // Predicated region
    $region14: #{stochastic_policy_forward.1} parent=1 // pred_check
      _
    $region15: #{stochastic_policy_forward.1} parent=1 // pred_check_branch
      %20 = sbr.rel (0) target = $region17
    $region16: #{stochastic_policy_forward.1} parent=1 // pred_region
      %22 = vsyncadd [#allocation3], 0
      %s23 = sshll.u32 %s3, 4
      %s24 = int_to_ptr.hbm [resolvable:$true] %s23
      %s25 = sshll.u32 [#allocation2], 4
      %s26 = int_to_ptr.vmem [resolvable:$true] %s25
      %31 = dma.hbm_to_vmem [thread:$0]  %s24, 16384, %s26, [#allocation3], 256, 256, 16
    $region17: #{stochastic_policy_forward.1} parent=1 // pred_fallthru
      _
    // Predicated region
    $region18: #{stochastic_policy_forward.1} parent=1 // pred_check
      _
    $region19: #{stochastic_policy_forward.1} parent=1 // pred_check_branch
      %33 = sbr.rel (0) target = $region21
    $region20: #{stochastic_policy_forward.1} parent=1 // pred_region
      _
    $region21: #{stochastic_policy_forward.1} parent=1 // pred_fallthru
      _
    // Predicated region
    $region22: #{stochastic_policy_forward.1} parent=1 // pred_check
      _
    $region23: #{stochastic_policy_forward.1} parent=1 // pred_check_branch
      %35 = sbr.rel (0) target = $region25
    $region24: #{stochastic_policy_forward.1} parent=1 // pred_region
      _
    $region25: #{stochastic_policy_forward.1} parent=1 // pred_fallthru
      _
    // Predicated region
    $region26: #{stochastic_policy_forward.1} parent=1 // pred_check
      _
    $region27: #{stochastic_policy_forward.1} parent=1 // pred_check_branch
      %37 = sbr.rel (0) target = $region29
    $region28: #{stochastic_policy_forward.1} parent=1 // pred_region
      _
    $region29: #{stochastic_policy_forward.1} parent=1 // pred_fallthru
      _
    // Predicated region
    $region30: #{stochastic_policy_forward.1} parent=1 // pred_check
      _
    $region31: #{stochastic_policy_forward.1} parent=1 // pred_check_branch
      %39 = sbr.rel (0) target = $region33
    $region32: #{stochastic_policy_forward.1} parent=1 // pred_region
      %41 = dma.done [#allocation3], 16384
    $region33: #{stochastic_policy_forward.1} parent=1 // pred_fallthru
      _
    %v43 = vld [vmem:[%s0] sm:$0xff]
    %v44 = vpack.c.bf16 %v43, %v43
    %v45 = vld [vmem:[%s1] sm:$0xff]
    %v46 = vld [vmem:[%s1 + $0x8] sm:$0xff]
    %v47 = vld [vmem:[%s2] sm:$0xf]
    %v49 = vperm.slane %v47, 0
    %v50 = vperm.slane %v47, 1
    %v51 = vperm.slane %v47, 2
    %v52 = vperm.slane %v47, 3
    %v59 = vunpack.c.l.b16 %v45
    %v60 = vunpack.c.h.b16 %v45
    %v61 = vunpack.c.l.b16 %v46
    %v62 = vunpack.c.h.b16 %v46
    %v63 = vpack.c.b16 %v59, %v59
    %v64 = vpack.c.b16 %v60, %v60
    %v65 = vpack.c.b16 %v61, %v61
    %v66 = vpack.c.b16 %v62, %v62
    %vm67 = vcmask 64512
    %v69 = vsel %vm67, %v44, 0
    %vm71 = vcmask 1043456
    %v73 = vsel %vm71, %v63, 0
    %v76 = vsel %vm71, %v64, 0
    %v79 = vsel %vm71, %v65, 0
    %v82 = vsel %vm71, %v66, 0
    %84 = vmatpush.bf16.msra.mxu0 0
    %85 = vmatpush.bf16.msra.mxu0 0
    %86 = vmatpush.bf16.msra.mxu0 0
    %87 = vmatpush.bf16.msra.mxu0 0
    %88 = vmatpush.bf16.msra.mxu0 0
    %89 = vmatpush.bf16.msra.mxu0 0
    %90 = vmatpush.bf16.msra.mxu0 0
    %91 = vmatpush.bf16.msra.mxu0 %v73
    %92 = vmatmul.bf16.gmra.mxu0 %v69
    %v93 = vpop.f32.mrf.mxu0
    %v94 = vadd.f32 %v49, %v93
    %v95 = vpop.f32.mrf.mxu0
    %96 = vdwg.mxu0
    %97 = vmatpush.bf16.msra.mxu0 0
    %98 = vmatpush.bf16.msra.mxu0 0
    %99 = vmatpush.bf16.msra.mxu0 0
    %100 = vmatpush.bf16.msra.mxu0 0
    %101 = vmatpush.bf16.msra.mxu0 0
    %102 = vmatpush.bf16.msra.mxu0 0
    %103 = vmatpush.bf16.msra.mxu0 0
    %104 = vmatpush.bf16.msra.mxu0 %v76
    %105 = vmatmul.bf16.gmra.mxu0 %v69
    %v106 = vpop.f32.mrf.mxu0
    %v107 = vadd.f32 %v50, %v106
    %v108 = vpop.f32.mrf.mxu0
    %109 = vdwg.mxu0
    %110 = vmatpush.bf16.msra.mxu0 0
    %111 = vmatpush.bf16.msra.mxu0 0
    %112 = vmatpush.bf16.msra.mxu0 0
    %113 = vmatpush.bf16.msra.mxu0 0
    %114 = vmatpush.bf16.msra.mxu0 0
    %115 = vmatpush.bf16.msra.mxu0 0
    %116 = vmatpush.bf16.msra.mxu0 0
    %117 = vmatpush.bf16.msra.mxu0 %v79
    %118 = vmatmul.bf16.gmra.mxu0 %v69
    %v119 = vpop.f32.mrf.mxu0
    %v120 = vadd.f32 %v51, %v119
    %v121 = vpop.f32.mrf.mxu0
    %122 = vdwg.mxu0
    %123 = vmatpush.bf16.msra.mxu0 0
    %124 = vmatpush.bf16.msra.mxu0 0
    %125 = vmatpush.bf16.msra.mxu0 0
    %126 = vmatpush.bf16.msra.mxu0 0
    %127 = vmatpush.bf16.msra.mxu0 0
    %128 = vmatpush.bf16.msra.mxu0 0
    %129 = vmatpush.bf16.msra.mxu0 0
    %130 = vmatpush.bf16.msra.mxu0 %v82
    %131 = vmatmul.bf16.gmra.mxu0 %v69
    %v132 = vpop.f32.mrf.mxu0
    %v133 = vadd.f32 %v52, %v132
    %v134 = vpop.f32.mrf.mxu0
    %135 = vdwg.mxu0
    %v136 = vmax.f32 %v94, 0.0
    %v137 = vmax.f32 %v107, 0.0
    %v138 = vmax.f32 %v120, 0.0
    %v139 = vmax.f32 %v133, 0.0
    %v140 = vpack.c.bf16 %v136, %v136
    %v141 = vpack.c.bf16 %v137, %v137
    %v142 = vpack.c.bf16 %v138, %v138
    %v143 = vpack.c.bf16 %v139, %v139
    %v144 = vld [vmem:[#allocation2] sm:$0xff]
    %v145 = vld [vmem:[#allocation2 + $0x8] sm:$0xff]
    %v146 = vld [vmem:[#allocation2 + $0x10] sm:$0xff]
    %v147 = vld [vmem:[#allocation2 + $0x18] sm:$0xff]
    %v148 = vld [vmem:[#allocation2 + $0x20] sm:$0xff]
    %v149 = vld [vmem:[#allocation2 + $0x28] sm:$0xff]
    %v150 = vld [vmem:[#allocation2 + $0x30] sm:$0xff]
    %v151 = vld [vmem:[#allocation2 + $0x38] sm:$0xff]
    %v152 = vld [vmem:[#allocation2 + $0x40] sm:$0xff]
    %v153 = vld [vmem:[#allocation2 + $0x48] sm:$0xff]
    %v154 = vld [vmem:[#allocation2 + $0x50] sm:$0xff]
    %v155 = vld [vmem:[#allocation2 + $0x58] sm:$0xff]
    %v156 = vld [vmem:[#allocation2 + $0x60] sm:$0xff]
    %v157 = vld [vmem:[#allocation2 + $0x68] sm:$0xff]
    %v158 = vld [vmem:[#allocation2 + $0x70] sm:$0xff]
    %v159 = vld [vmem:[#allocation2 + $0x78] sm:$0xff]
    %v160 = vld [vmem:[#allocation2 + $0x80] sm:$0xff]
    %v161 = vld [vmem:[#allocation2 + $0x88] sm:$0xff]
    %v162 = vld [vmem:[#allocation2 + $0x90] sm:$0xff]
    %v163 = vld [vmem:[#allocation2 + $0x98] sm:$0xff]
    %v164 = vld [vmem:[#allocation2 + $0xa0] sm:$0xff]
    %v165 = vld [vmem:[#allocation2 + $0xa8] sm:$0xff]
    %v166 = vld [vmem:[#allocation2 + $0xb0] sm:$0xff]
    %v167 = vld [vmem:[#allocation2 + $0xb8] sm:$0xff]
    %v168 = vld [vmem:[#allocation2 + $0xc0] sm:$0xff]
    %v169 = vld [vmem:[#allocation2 + $0xc8] sm:$0xff]
    %v170 = vld [vmem:[#allocation2 + $0xd0] sm:$0xff]
    %v171 = vld [vmem:[#allocation2 + $0xd8] sm:$0xff]
    %v172 = vld [vmem:[#allocation2 + $0xe0] sm:$0xff]
    %v173 = vld [vmem:[#allocation2 + $0xe8] sm:$0xff]
    %v174 = vld [vmem:[#allocation2 + $0xf0] sm:$0xff]
    %v175 = vld [vmem:[#allocation2 + $0xf8] sm:$0xff]
    %v176 = vld [vmem:[#allocation2 + $0x100] sm:$0xff]
    %v177 = vld [vmem:[#allocation2 + $0x108] sm:$0xff]
    %v178 = vld [vmem:[#allocation2 + $0x110] sm:$0xff]
    %v179 = vld [vmem:[#allocation2 + $0x118] sm:$0xff]
    %v180 = vld [vmem:[#allocation2 + $0x120] sm:$0xff]
    %v181 = vld [vmem:[#allocation2 + $0x128] sm:$0xff]
    %v182 = vld [vmem:[#allocation2 + $0x130] sm:$0xff]
    %v183 = vld [vmem:[#allocation2 + $0x138] sm:$0xff]
    %v184 = vld [vmem:[#allocation2 + $0x140] sm:$0xff]
    %v185 = vld [vmem:[#allocation2 + $0x148] sm:$0xff]
    %v186 = vld [vmem:[#allocation2 + $0x150] sm:$0xff]
    %v187 = vld [vmem:[#allocation2 + $0x158] sm:$0xff]
    %v188 = vld [vmem:[#allocation2 + $0x160] sm:$0xff]
    %v189 = vld [vmem:[#allocation2 + $0x168] sm:$0xff]
    %v190 = vld [vmem:[#allocation2 + $0x170] sm:$0xff]
    %v191 = vld [vmem:[#allocation2 + $0x178] sm:$0xff]
    %v192 = vld [vmem:[#allocation2 + $0x180] sm:$0xff]
    %v193 = vld [vmem:[#allocation2 + $0x188] sm:$0xff]
    %v194 = vld [vmem:[#allocation2 + $0x190] sm:$0xff]
    %v195 = vld [vmem:[#allocation2 + $0x198] sm:$0xff]
    %v196 = vld [vmem:[#allocation2 + $0x1a0] sm:$0xff]
    %v197 = vld [vmem:[#allocation2 + $0x1a8] sm:$0xff]
    %v198 = vld [vmem:[#allocation2 + $0x1b0] sm:$0xff]
    %v199 = vld [vmem:[#allocation2 + $0x1b8] sm:$0xff]
    %v200 = vld [vmem:[#allocation2 + $0x1c0] sm:$0xff]
    %v201 = vld [vmem:[#allocation2 + $0x1c8] sm:$0xff]
    %v202 = vld [vmem:[#allocation2 + $0x1d0] sm:$0xff]
    %v203 = vld [vmem:[#allocation2 + $0x1d8] sm:$0xff]
    %v204 = vld [vmem:[#allocation2 + $0x1e0] sm:$0xff]
    %v205 = vld [vmem:[#allocation2 + $0x1e8] sm:$0xff]
    %v206 = vld [vmem:[#allocation2 + $0x1f0] sm:$0xff]
    %v207 = vld [vmem:[#allocation2 + $0x1f8] sm:$0xff]
    %v208 = vld [vmem:[#allocation2 + $0x200] sm:$0xff]
    %v209 = vld [vmem:[#allocation2 + $0x208] sm:$0xff]
    %v210 = vld [vmem:[#allocation2 + $0x210] sm:$0xff]
    %v211 = vld [vmem:[#allocation2 + $0x218] sm:$0xff]
    %v212 = vld [vmem:[#allocation2 + $0x220] sm:$0xff]
    %v213 = vld [vmem:[#allocation2 + $0x228] sm:$0xff]
    %v214 = vld [vmem:[#allocation2 + $0x230] sm:$0xff]
    %v215 = vld [vmem:[#allocation2 + $0x238] sm:$0xff]
    %v216 = vld [vmem:[#allocation2 + $0x240] sm:$0xff]
    %v217 = vld [vmem:[#allocation2 + $0x248] sm:$0xff]
    %v218 = vld [vmem:[#allocation2 + $0x250] sm:$0xff]
    %v219 = vld [vmem:[#allocation2 + $0x258] sm:$0xff]
    %v220 = vld [vmem:[#allocation2 + $0x260] sm:$0xff]
    %v221 = vld [vmem:[#allocation2 + $0x268] sm:$0xff]
    %v222 = vld [vmem:[#allocation2 + $0x270] sm:$0xff]
    %v223 = vld [vmem:[#allocation2 + $0x278] sm:$0xff]
    %v224 = vld [vmem:[#allocation2 + $0x280] sm:$0xff]
    %v225 = vld [vmem:[#allocation2 + $0x288] sm:$0xff]
    %v226 = vld [vmem:[#allocation2 + $0x290] sm:$0xff]
    %v227 = vld [vmem:[#allocation2 + $0x298] sm:$0xff]
    %v228 = vld [vmem:[#allocation2 + $0x2a0] sm:$0xff]
    %v229 = vld [vmem:[#allocation2 + $0x2a8] sm:$0xff]
    %v230 = vld [vmem:[#allocation2 + $0x2b0] sm:$0xff]
    %v231 = vld [vmem:[#allocation2 + $0x2b8] sm:$0xff]
    %v232 = vld [vmem:[#allocation2 + $0x2c0] sm:$0xff]
    %v233 = vld [vmem:[#allocation2 + $0x2c8] sm:$0xff]
    %v234 = vld [vmem:[#allocation2 + $0x2d0] sm:$0xff]
    %v235 = vld [vmem:[#allocation2 + $0x2d8] sm:$0xff]
    %v236 = vld [vmem:[#allocation2 + $0x2e0] sm:$0xff]
    %v237 = vld [vmem:[#allocation2 + $0x2e8] sm:$0xff]
    %v238 = vld [vmem:[#allocation2 + $0x2f0] sm:$0xff]
    %v239 = vld [vmem:[#allocation2 + $0x2f8] sm:$0xff]
    %v240 = vld [vmem:[#allocation2 + $0x300] sm:$0xff]
    %v241 = vld [vmem:[#allocation2 + $0x308] sm:$0xff]
    %v242 = vld [vmem:[#allocation2 + $0x310] sm:$0xff]
    %v243 = vld [vmem:[#allocation2 + $0x318] sm:$0xff]
    %v244 = vld [vmem:[#allocation2 + $0x320] sm:$0xff]
    %v245 = vld [vmem:[#allocation2 + $0x328] sm:$0xff]
    %v246 = vld [vmem:[#allocation2 + $0x330] sm:$0xff]
    %v247 = vld [vmem:[#allocation2 + $0x338] sm:$0xff]
    %v248 = vld [vmem:[#allocation2 + $0x340] sm:$0xff]
    %v249 = vld [vmem:[#allocation2 + $0x348] sm:$0xff]
    %v250 = vld [vmem:[#allocation2 + $0x350] sm:$0xff]
    %v251 = vld [vmem:[#allocation2 + $0x358] sm:$0xff]
    %v252 = vld [vmem:[#allocation2 + $0x360] sm:$0xff]
    %v253 = vld [vmem:[#allocation2 + $0x368] sm:$0xff]
    %v254 = vld [vmem:[#allocation2 + $0x370] sm:$0xff]
    %v255 = vld [vmem:[#allocation2 + $0x378] sm:$0xff]
    %v256 = vld [vmem:[#allocation2 + $0x380] sm:$0xff]
    %v257 = vld [vmem:[#allocation2 + $0x388] sm:$0xff]
    %v258 = vld [vmem:[#allocation2 + $0x390] sm:$0xff]
    %v259 = vld [vmem:[#allocation2 + $0x398] sm:$0xff]
    %v260 = vld [vmem:[#allocation2 + $0x3a0] sm:$0xff]
    %v261 = vld [vmem:[#allocation2 + $0x3a8] sm:$0xff]
    %v262 = vld [vmem:[#allocation2 + $0x3b0] sm:$0xff]
    %v263 = vld [vmem:[#allocation2 + $0x3b8] sm:$0xff]
    %v264 = vld [vmem:[#allocation2 + $0x3c0] sm:$0xff]
    %v265 = vld [vmem:[#allocation2 + $0x3c8] sm:$0xff]
    %v266 = vld [vmem:[#allocation2 + $0x3d0] sm:$0xff]
    %v267 = vld [vmem:[#allocation2 + $0x3d8] sm:$0xff]
    %v268 = vld [vmem:[#allocation2 + $0x3e0] sm:$0xff]
    %v269 = vld [vmem:[#allocation2 + $0x3e8] sm:$0xff]
    %v270 = vld [vmem:[#allocation2 + $0x3f0] sm:$0xff]
    %v271 = vld [vmem:[#allocation2 + $0x3f8] sm:$0xff]
    %v272 = vld [vmem:[%s4] sm:$0xf]
    %v274 = vperm.slane %v272, 0
    %v275 = vperm.slane %v272, 1
    %v276 = vperm.slane %v272, 2
    %v277 = vperm.slane %v272, 3
    %v410 = vunpack.c.l.b16 %v144
    %v411 = vunpack.c.h.b16 %v144
    %v412 = vunpack.c.l.b16 %v145
    %v413 = vunpack.c.h.b16 %v145
    %v414 = vunpack.c.l.b16 %v146
    %v415 = vunpack.c.h.b16 %v146
    %v416 = vunpack.c.l.b16 %v147
    %v417 = vunpack.c.h.b16 %v147
    %v418 = vunpack.c.l.b16 %v148
    %v419 = vunpack.c.h.b16 %v148
    %v420 = vunpack.c.l.b16 %v149
    %v421 = vunpack.c.h.b16 %v149
    %v422 = vunpack.c.l.b16 %v150
    %v423 = vunpack.c.h.b16 %v150
    %v424 = vunpack.c.l.b16 %v151
    %v425 = vunpack.c.h.b16 %v151
    %v426 = vunpack.c.l.b16 %v152
    %v427 = vunpack.c.h.b16 %v152
    %v428 = vunpack.c.l.b16 %v153
    %v429 = vunpack.c.h.b16 %v153
    %v430 = vunpack.c.l.b16 %v154
    %v431 = vunpack.c.h.b16 %v154
    %v432 = vunpack.c.l.b16 %v155
    %v433 = vunpack.c.h.b16 %v155
    %v434 = vunpack.c.l.b16 %v156
    %v435 = vunpack.c.h.b16 %v156
    %v436 = vunpack.c.l.b16 %v157
    %v437 = vunpack.c.h.b16 %v157
    %v438 = vunpack.c.l.b16 %v158
    %v439 = vunpack.c.h.b16 %v158
    %v440 = vunpack.c.l.b16 %v159
    %v441 = vunpack.c.h.b16 %v159
    %v442 = vunpack.c.l.b16 %v160
    %v443 = vunpack.c.h.b16 %v160
    %v444 = vunpack.c.l.b16 %v161
    %v445 = vunpack.c.h.b16 %v161
    %v446 = vunpack.c.l.b16 %v162
    %v447 = vunpack.c.h.b16 %v162
    %v448 = vunpack.c.l.b16 %v163
    %v449 = vunpack.c.h.b16 %v163
    %v450 = vunpack.c.l.b16 %v164
    %v451 = vunpack.c.h.b16 %v164
    %v452 = vunpack.c.l.b16 %v165
    %v453 = vunpack.c.h.b16 %v165
    %v454 = vunpack.c.l.b16 %v166
    %v455 = vunpack.c.h.b16 %v166
    %v456 = vunpack.c.l.b16 %v167
    %v457 = vunpack.c.h.b16 %v167
    %v458 = vunpack.c.l.b16 %v168
    %v459 = vunpack.c.h.b16 %v168
    %v460 = vunpack.c.l.b16 %v169
    %v461 = vunpack.c.h.b16 %v169
    %v462 = vunpack.c.l.b16 %v170
    %v463 = vunpack.c.h.b16 %v170
    %v464 = vunpack.c.l.b16 %v171
    %v465 = vunpack.c.h.b16 %v171
    %v466 = vunpack.c.l.b16 %v172
    %v467 = vunpack.c.h.b16 %v172
    %v468 = vunpack.c.l.b16 %v173
    %v469 = vunpack.c.h.b16 %v173
    %v470 = vunpack.c.l.b16 %v174
    %v471 = vunpack.c.h.b16 %v174
    %v472 = vunpack.c.l.b16 %v175
    %v473 = vunpack.c.h.b16 %v175
    %v474 = vunpack.c.l.b16 %v176
    %v475 = vunpack.c.h.b16 %v176
    %v476 = vunpack.c.l.b16 %v177
    %v477 = vunpack.c.h.b16 %v177
    %v478 = vunpack.c.l.b16 %v178
    %v479 = vunpack.c.h.b16 %v178
    %v480 = vunpack.c.l.b16 %v179
    %v481 = vunpack.c.h.b16 %v179
    %v482 = vunpack.c.l.b16 %v180
    %v483 = vunpack.c.h.b16 %v180
    %v484 = vunpack.c.l.b16 %v181
    %v485 = vunpack.c.h.b16 %v181
    %v486 = vunpack.c.l.b16 %v182
    %v487 = vunpack.c.h.b16 %v182
    %v488 = vunpack.c.l.b16 %v183
    %v489 = vunpack.c.h.b16 %v183
    %v490 = vunpack.c.l.b16 %v184
    %v491 = vunpack.c.h.b16 %v184
    %v492 = vunpack.c.l.b16 %v185
    %v493 = vunpack.c.h.b16 %v185
    %v494 = vunpack.c.l.b16 %v186
    %v495 = vunpack.c.h.b16 %v186
    %v496 = vunpack.c.l.b16 %v187
    %v497 = vunpack.c.h.b16 %v187
    %v498 = vunpack.c.l.b16 %v188
    %v499 = vunpack.c.h.b16 %v188
    %v500 = vunpack.c.l.b16 %v189
    %v501 = vunpack.c.h.b16 %v189
    %v502 = vunpack.c.l.b16 %v190
    %v503 = vunpack.c.h.b16 %v190
    %v504 = vunpack.c.l.b16 %v191
    %v505 = vunpack.c.h.b16 %v191
    %v506 = vunpack.c.l.b16 %v192
    %v507 = vunpack.c.h.b16 %v192
    %v508 = vunpack.c.l.b16 %v193
    %v509 = vunpack.c.h.b16 %v193
    %v510 = vunpack.c.l.b16 %v194
    %v511 = vunpack.c.h.b16 %v194
    %v512 = vunpack.c.l.b16 %v195
    %v513 = vunpack.c.h.b16 %v195
    %v514 = vunpack.c.l.b16 %v196
    %v515 = vunpack.c.h.b16 %v196
    %v516 = vunpack.c.l.b16 %v197
    %v517 = vunpack.c.h.b16 %v197
    %v518 = vunpack.c.l.b16 %v198
    %v519 = vunpack.c.h.b16 %v198
    %v520 = vunpack.c.l.b16 %v199
    %v521 = vunpack.c.h.b16 %v199
    %v522 = vunpack.c.l.b16 %v200
    %v523 = vunpack.c.h.b16 %v200
    %v524 = vunpack.c.l.b16 %v201
    %v525 = vunpack.c.h.b16 %v201
    %v526 = vunpack.c.l.b16 %v202
    %v527 = vunpack.c.h.b16 %v202
    %v528 = vunpack.c.l.b16 %v203
    %v529 = vunpack.c.h.b16 %v203
    %v530 = vunpack.c.l.b16 %v204
    %v531 = vunpack.c.h.b16 %v204
    %v532 = vunpack.c.l.b16 %v205
    %v533 = vunpack.c.h.b16 %v205
    %v534 = vunpack.c.l.b16 %v206
    %v535 = vunpack.c.h.b16 %v206
    %v536 = vunpack.c.l.b16 %v207
    %v537 = vunpack.c.h.b16 %v207
    %v538 = vunpack.c.l.b16 %v208
    %v539 = vunpack.c.h.b16 %v208
    %v540 = vunpack.c.l.b16 %v209
    %v541 = vunpack.c.h.b16 %v209
    %v542 = vunpack.c.l.b16 %v210
    %v543 = vunpack.c.h.b16 %v210
    %v544 = vunpack.c.l.b16 %v211
    %v545 = vunpack.c.h.b16 %v211
    %v546 = vunpack.c.l.b16 %v212
    %v547 = vunpack.c.h.b16 %v212
    %v548 = vunpack.c.l.b16 %v213
    %v549 = vunpack.c.h.b16 %v213
    %v550 = vunpack.c.l.b16 %v214
    %v551 = vunpack.c.h.b16 %v214
    %v552 = vunpack.c.l.b16 %v215
    %v553 = vunpack.c.h.b16 %v215
    %v554 = vunpack.c.l.b16 %v216
    %v555 = vunpack.c.h.b16 %v216
    %v556 = vunpack.c.l.b16 %v217
    %v557 = vunpack.c.h.b16 %v217
    %v558 = vunpack.c.l.b16 %v218
    %v559 = vunpack.c.h.b16 %v218
    %v560 = vunpack.c.l.b16 %v219
    %v561 = vunpack.c.h.b16 %v219
    %v562 = vunpack.c.l.b16 %v220
    %v563 = vunpack.c.h.b16 %v220
    %v564 = vunpack.c.l.b16 %v221
    %v565 = vunpack.c.h.b16 %v221
    %v566 = vunpack.c.l.b16 %v222
    %v567 = vunpack.c.h.b16 %v222
    %v568 = vunpack.c.l.b16 %v223
    %v569 = vunpack.c.h.b16 %v223
    %v570 = vunpack.c.l.b16 %v224
    %v571 = vunpack.c.h.b16 %v224
    %v572 = vunpack.c.l.b16 %v225
    %v573 = vunpack.c.h.b16 %v225
    %v574 = vunpack.c.l.b16 %v226
    %v575 = vunpack.c.h.b16 %v226
    %v576 = vunpack.c.l.b16 %v227
    %v577 = vunpack.c.h.b16 %v227
    %v578 = vunpack.c.l.b16 %v228
    %v579 = vunpack.c.h.b16 %v228
    %v580 = vunpack.c.l.b16 %v229
    %v581 = vunpack.c.h.b16 %v229
    %v582 = vunpack.c.l.b16 %v230
    %v583 = vunpack.c.h.b16 %v230
    %v584 = vunpack.c.l.b16 %v231
    %v585 = vunpack.c.h.b16 %v231
    %v586 = vunpack.c.l.b16 %v232
    %v587 = vunpack.c.h.b16 %v232
    %v588 = vunpack.c.l.b16 %v233
    %v589 = vunpack.c.h.b16 %v233
    %v590 = vunpack.c.l.b16 %v234
    %v591 = vunpack.c.h.b16 %v234
    %v592 = vunpack.c.l.b16 %v235
    %v593 = vunpack.c.h.b16 %v235
    %v594 = vunpack.c.l.b16 %v236
    %v595 = vunpack.c.h.b16 %v236
    %v596 = vunpack.c.l.b16 %v237
    %v597 = vunpack.c.h.b16 %v237
    %v598 = vunpack.c.l.b16 %v238
    %v599 = vunpack.c.h.b16 %v238
    %v600 = vunpack.c.l.b16 %v239
    %v601 = vunpack.c.h.b16 %v239
    %v602 = vunpack.c.l.b16 %v240
    %v603 = vunpack.c.h.b16 %v240
    %v604 = vunpack.c.l.b16 %v241
    %v605 = vunpack.c.h.b16 %v241
    %v606 = vunpack.c.l.b16 %v242
    %v607 = vunpack.c.h.b16 %v242
    %v608 = vunpack.c.l.b16 %v243
    %v609 = vunpack.c.h.b16 %v243
    %v610 = vunpack.c.l.b16 %v244
    %v611 = vunpack.c.h.b16 %v244
    %v612 = vunpack.c.l.b16 %v245
    %v613 = vunpack.c.h.b16 %v245
    %v614 = vunpack.c.l.b16 %v246
    %v615 = vunpack.c.h.b16 %v246
    %v616 = vunpack.c.l.b16 %v247
    %v617 = vunpack.c.h.b16 %v247
    %v618 = vunpack.c.l.b16 %v248
    %v619 = vunpack.c.h.b16 %v248
    %v620 = vunpack.c.l.b16 %v249
    %v621 = vunpack.c.h.b16 %v249
    %v622 = vunpack.c.l.b16 %v250
    %v623 = vunpack.c.h.b16 %v250
    %v624 = vunpack.c.l.b16 %v251
    %v625 = vunpack.c.h.b16 %v251
    %v626 = vunpack.c.l.b16 %v252
    %v627 = vunpack.c.h.b16 %v252
    %v628 = vunpack.c.l.b16 %v253
    %v629 = vunpack.c.h.b16 %v253
    %v630 = vunpack.c.l.b16 %v254
    %v631 = vunpack.c.h.b16 %v254
    %v632 = vunpack.c.l.b16 %v255
    %v633 = vunpack.c.h.b16 %v255
    %v634 = vunpack.c.l.b16 %v256
    %v635 = vunpack.c.h.b16 %v256
    %v636 = vunpack.c.l.b16 %v257
    %v637 = vunpack.c.h.b16 %v257
    %v638 = vunpack.c.l.b16 %v258
    %v639 = vunpack.c.h.b16 %v258
    %v640 = vunpack.c.l.b16 %v259
    %v641 = vunpack.c.h.b16 %v259
    %v642 = vunpack.c.l.b16 %v260
    %v643 = vunpack.c.h.b16 %v260
    %v644 = vunpack.c.l.b16 %v261
    %v645 = vunpack.c.h.b16 %v261
    %v646 = vunpack.c.l.b16 %v262
    %v647 = vunpack.c.h.b16 %v262
    %v648 = vunpack.c.l.b16 %v263
    %v649 = vunpack.c.h.b16 %v263
    %v650 = vunpack.c.l.b16 %v264
    %v651 = vunpack.c.h.b16 %v264
    %v652 = vunpack.c.l.b16 %v265
    %v653 = vunpack.c.h.b16 %v265
    %v654 = vunpack.c.l.b16 %v266
    %v655 = vunpack.c.h.b16 %v266
    %v656 = vunpack.c.l.b16 %v267
    %v657 = vunpack.c.h.b16 %v267
    %v658 = vunpack.c.l.b16 %v268
    %v659 = vunpack.c.h.b16 %v268
    %v660 = vunpack.c.l.b16 %v269
    %v661 = vunpack.c.h.b16 %v269
    %v662 = vunpack.c.l.b16 %v270
    %v663 = vunpack.c.h.b16 %v270
    %v664 = vunpack.c.l.b16 %v271
    %v665 = vunpack.c.h.b16 %v271
    %v666 = vpack.c.b16 %v414, %v410
    %v667 = vpack.c.b16 %v415, %v411
    %v668 = vpack.c.b16 %v416, %v412
    %v669 = vpack.c.b16 %v417, %v413
    %v670 = vpack.c.b16 %v422, %v418
    %v671 = vpack.c.b16 %v423, %v419
    %v672 = vpack.c.b16 %v424, %v420
    %v673 = vpack.c.b16 %v425, %v421
    %v674 = vpack.c.b16 %v430, %v426
    %v675 = vpack.c.b16 %v431, %v427
    %v676 = vpack.c.b16 %v432, %v428
    %v677 = vpack.c.b16 %v433, %v429
    %v678 = vpack.c.b16 %v438, %v434
    %v679 = vpack.c.b16 %v439, %v435
    %v680 = vpack.c.b16 %v440, %v436
    %v681 = vpack.c.b16 %v441, %v437
    %v682 = vpack.c.b16 %v446, %v442
    %v683 = vpack.c.b16 %v447, %v443
    %v684 = vpack.c.b16 %v448, %v444
    %v685 = vpack.c.b16 %v449, %v445
    %v686 = vpack.c.b16 %v454, %v450
    %v687 = vpack.c.b16 %v455, %v451
    %v688 = vpack.c.b16 %v456, %v452
    %v689 = vpack.c.b16 %v457, %v453
    %v690 = vpack.c.b16 %v462, %v458
    %v691 = vpack.c.b16 %v463, %v459
    %v692 = vpack.c.b16 %v464, %v460
    %v693 = vpack.c.b16 %v465, %v461
    %v694 = vpack.c.b16 %v470, %v466
    %v695 = vpack.c.b16 %v471, %v467
    %v696 = vpack.c.b16 %v472, %v468
    %v697 = vpack.c.b16 %v473, %v469
    %v698 = vpack.c.b16 %v478, %v474
    %v699 = vpack.c.b16 %v479, %v475
    %v700 = vpack.c.b16 %v480, %v476
    %v701 = vpack.c.b16 %v481, %v477
    %v702 = vpack.c.b16 %v486, %v482
    %v703 = vpack.c.b16 %v487, %v483
    %v704 = vpack.c.b16 %v488, %v484
    %v705 = vpack.c.b16 %v489, %v485
    %v706 = vpack.c.b16 %v494, %v490
    %v707 = vpack.c.b16 %v495, %v491
    %v708 = vpack.c.b16 %v496, %v492
    %v709 = vpack.c.b16 %v497, %v493
    %v710 = vpack.c.b16 %v502, %v498
    %v711 = vpack.c.b16 %v503, %v499
    %v712 = vpack.c.b16 %v504, %v500
    %v713 = vpack.c.b16 %v505, %v501
    %v714 = vpack.c.b16 %v510, %v506
    %v715 = vpack.c.b16 %v511, %v507
    %v716 = vpack.c.b16 %v512, %v508
    %v717 = vpack.c.b16 %v513, %v509
    %v718 = vpack.c.b16 %v518, %v514
    %v719 = vpack.c.b16 %v519, %v515
    %v720 = vpack.c.b16 %v520, %v516
    %v721 = vpack.c.b16 %v521, %v517
    %v722 = vpack.c.b16 %v526, %v522
    %v723 = vpack.c.b16 %v527, %v523
    %v724 = vpack.c.b16 %v528, %v524
    %v725 = vpack.c.b16 %v529, %v525
    %v726 = vpack.c.b16 %v534, %v530
    %v727 = vpack.c.b16 %v535, %v531
    %v728 = vpack.c.b16 %v536, %v532
    %v729 = vpack.c.b16 %v537, %v533
    %v730 = vpack.c.b16 %v542, %v538
    %v731 = vpack.c.b16 %v543, %v539
    %v732 = vpack.c.b16 %v544, %v540
    %v733 = vpack.c.b16 %v545, %v541
    %v734 = vpack.c.b16 %v550, %v546
    %v735 = vpack.c.b16 %v551, %v547
    %v736 = vpack.c.b16 %v552, %v548
    %v737 = vpack.c.b16 %v553, %v549
    %v738 = vpack.c.b16 %v558, %v554
    %v739 = vpack.c.b16 %v559, %v555
    %v740 = vpack.c.b16 %v560, %v556
    %v741 = vpack.c.b16 %v561, %v557
    %v742 = vpack.c.b16 %v566, %v562
    %v743 = vpack.c.b16 %v567, %v563
    %v744 = vpack.c.b16 %v568, %v564
    %v745 = vpack.c.b16 %v569, %v565
    %v746 = vpack.c.b16 %v574, %v570
    %v747 = vpack.c.b16 %v575, %v571
    %v748 = vpack.c.b16 %v576, %v572
    %v749 = vpack.c.b16 %v577, %v573
    %v750 = vpack.c.b16 %v582, %v578
    %v751 = vpack.c.b16 %v583, %v579
    %v752 = vpack.c.b16 %v584, %v580
    %v753 = vpack.c.b16 %v585, %v581
    %v754 = vpack.c.b16 %v590, %v586
    %v755 = vpack.c.b16 %v591, %v587
    %v756 = vpack.c.b16 %v592, %v588
    %v757 = vpack.c.b16 %v593, %v589
    %v758 = vpack.c.b16 %v598, %v594
    %v759 = vpack.c.b16 %v599, %v595
    %v760 = vpack.c.b16 %v600, %v596
    %v761 = vpack.c.b16 %v601, %v597
    %v762 = vpack.c.b16 %v606, %v602
    %v763 = vpack.c.b16 %v607, %v603
    %v764 = vpack.c.b16 %v608, %v604
    %v765 = vpack.c.b16 %v609, %v605
    %v766 = vpack.c.b16 %v614, %v610
    %v767 = vpack.c.b16 %v615, %v611
    %v768 = vpack.c.b16 %v616, %v612
    %v769 = vpack.c.b16 %v617, %v613
    %v770 = vpack.c.b16 %v622, %v618
    %v771 = vpack.c.b16 %v623, %v619
    %v772 = vpack.c.b16 %v624, %v620
    %v773 = vpack.c.b16 %v625, %v621
    %v774 = vpack.c.b16 %v630, %v626
    %v775 = vpack.c.b16 %v631, %v627
    %v776 = vpack.c.b16 %v632, %v628
    %v777 = vpack.c.b16 %v633, %v629
    %v778 = vpack.c.b16 %v638, %v634
    %v779 = vpack.c.b16 %v639, %v635
    %v780 = vpack.c.b16 %v640, %v636
    %v781 = vpack.c.b16 %v641, %v637
    %v782 = vpack.c.b16 %v646, %v642
    %v783 = vpack.c.b16 %v647, %v643
    %v784 = vpack.c.b16 %v648, %v644
    %v785 = vpack.c.b16 %v649, %v645
    %v786 = vpack.c.b16 %v654, %v650
    %v787 = vpack.c.b16 %v655, %v651
    %v788 = vpack.c.b16 %v656, %v652
    %v789 = vpack.c.b16 %v657, %v653
    %v790 = vpack.c.b16 %v662, %v658
    %v791 = vpack.c.b16 %v663, %v659
    %v792 = vpack.c.b16 %v664, %v660
    %v793 = vpack.c.b16 %v665, %v661
    %922 = vmatpush.bf16.msra.mxu0 %v694
    %923 = vmatpush.bf16.msra.mxu0 %v690
    %924 = vmatpush.bf16.msra.mxu0 %v686
    %925 = vmatpush.bf16.msra.mxu0 %v682
    %926 = vmatpush.bf16.msra.mxu0 %v678
    %927 = vmatpush.bf16.msra.mxu0 %v674
    %928 = vmatpush.bf16.msra.mxu0 %v670
    %929 = vmatpush.bf16.msra.mxu0 %v666
    %930 = vmatmul.bf16.gmra.mxu0 %v140
    %v931 = vpop.f32.mrf.mxu0
    %v932 = vadd.f32 %v274, %v931
    %v933 = vpop.f32.mrf.mxu0
    %934 = vdwg.mxu0
    %935 = vmatpush.bf16.msra.mxu0 %v726
    %936 = vmatpush.bf16.msra.mxu0 %v722
    %937 = vmatpush.bf16.msra.mxu0 %v718
    %938 = vmatpush.bf16.msra.mxu0 %v714
    %939 = vmatpush.bf16.msra.mxu0 %v710
    %940 = vmatpush.bf16.msra.mxu0 %v706
    %941 = vmatpush.bf16.msra.mxu0 %v702
    %942 = vmatpush.bf16.msra.mxu0 %v698
    %943 = vmatmul.bf16.gmra.mxu0 %v141
    %v944 = vpop.f32.mrf.mxu0
    %v945 = vadd.f32 %v932, %v944
    %v946 = vpop.f32.mrf.mxu0
    %947 = vdwg.mxu0
    %948 = vmatpush.bf16.msra.mxu0 %v758
    %949 = vmatpush.bf16.msra.mxu0 %v754
    %950 = vmatpush.bf16.msra.mxu0 %v750
    %951 = vmatpush.bf16.msra.mxu0 %v746
    %952 = vmatpush.bf16.msra.mxu0 %v742
    %953 = vmatpush.bf16.msra.mxu0 %v738
    %954 = vmatpush.bf16.msra.mxu0 %v734
    %955 = vmatpush.bf16.msra.mxu0 %v730
    %956 = vmatmul.bf16.gmra.mxu0 %v142
    %v957 = vpop.f32.mrf.mxu0
    %v958 = vadd.f32 %v945, %v957
    %v959 = vpop.f32.mrf.mxu0
    %960 = vdwg.mxu0
    %961 = vmatpush.bf16.msra.mxu0 %v790
    %962 = vmatpush.bf16.msra.mxu0 %v786
    %963 = vmatpush.bf16.msra.mxu0 %v782
    %964 = vmatpush.bf16.msra.mxu0 %v778
    %965 = vmatpush.bf16.msra.mxu0 %v774
    %966 = vmatpush.bf16.msra.mxu0 %v770
    %967 = vmatpush.bf16.msra.mxu0 %v766
    %968 = vmatpush.bf16.msra.mxu0 %v762
    %969 = vmatmul.bf16.gmra.mxu0 %v143
    %v970 = vpop.f32.mrf.mxu0
    %v971 = vadd.f32 %v958, %v970
    %v972 = vpop.f32.mrf.mxu0
    %973 = vdwg.mxu0
    %974 = vmatpush.bf16.msra.mxu0 %v695
    %975 = vmatpush.bf16.msra.mxu0 %v691
    %976 = vmatpush.bf16.msra.mxu0 %v687
    %977 = vmatpush.bf16.msra.mxu0 %v683
    %978 = vmatpush.bf16.msra.mxu0 %v679
    %979 = vmatpush.bf16.msra.mxu0 %v675
    %980 = vmatpush.bf16.msra.mxu0 %v671
    %981 = vmatpush.bf16.msra.mxu0 %v667
    %982 = vmatmul.bf16.gmra.mxu0 %v140
    %v983 = vpop.f32.mrf.mxu0
    %v984 = vadd.f32 %v275, %v983
    %v985 = vpop.f32.mrf.mxu0
    %986 = vdwg.mxu0
    %987 = vmatpush.bf16.msra.mxu0 %v727
    %988 = vmatpush.bf16.msra.mxu0 %v723
    %989 = vmatpush.bf16.msra.mxu0 %v719
    %990 = vmatpush.bf16.msra.mxu0 %v715
    %991 = vmatpush.bf16.msra.mxu0 %v711
    %992 = vmatpush.bf16.msra.mxu0 %v707
    %993 = vmatpush.bf16.msra.mxu0 %v703
    %994 = vmatpush.bf16.msra.mxu0 %v699
    %995 = vmatmul.bf16.gmra.mxu0 %v141
    %v996 = vpop.f32.mrf.mxu0
    %v997 = vadd.f32 %v984, %v996
    %v998 = vpop.f32.mrf.mxu0
    %999 = vdwg.mxu0
    %1000 = vmatpush.bf16.msra.mxu0 %v759
    %1001 = vmatpush.bf16.msra.mxu0 %v755
    %1002 = vmatpush.bf16.msra.mxu0 %v751
    %1003 = vmatpush.bf16.msra.mxu0 %v747
    %1004 = vmatpush.bf16.msra.mxu0 %v743
    %1005 = vmatpush.bf16.msra.mxu0 %v739
    %1006 = vmatpush.bf16.msra.mxu0 %v735
    %1007 = vmatpush.bf16.msra.mxu0 %v731
    %1008 = vmatmul.bf16.gmra.mxu0 %v142
    %v1009 = vpop.f32.mrf.mxu0
    %v1010 = vadd.f32 %v997, %v1009
    %v1011 = vpop.f32.mrf.mxu0
    %1012 = vdwg.mxu0
    %1013 = vmatpush.bf16.msra.mxu0 %v791
    %1014 = vmatpush.bf16.msra.mxu0 %v787
    %1015 = vmatpush.bf16.msra.mxu0 %v783
    %1016 = vmatpush.bf16.msra.mxu0 %v779
    %1017 = vmatpush.bf16.msra.mxu0 %v775
    %1018 = vmatpush.bf16.msra.mxu0 %v771
    %1019 = vmatpush.bf16.msra.mxu0 %v767
    %1020 = vmatpush.bf16.msra.mxu0 %v763
    %1021 = vmatmul.bf16.gmra.mxu0 %v143
    %v1022 = vpop.f32.mrf.mxu0
    %v1023 = vadd.f32 %v1010, %v1022
    %v1024 = vpop.f32.mrf.mxu0
    %1025 = vdwg.mxu0
    %1026 = vmatpush.bf16.msra.mxu0 %v696
    %1027 = vmatpush.bf16.msra.mxu0 %v692
    %1028 = vmatpush.bf16.msra.mxu0 %v688
    %1029 = vmatpush.bf16.msra.mxu0 %v684
    %1030 = vmatpush.bf16.msra.mxu0 %v680
    %1031 = vmatpush.bf16.msra.mxu0 %v676
    %1032 = vmatpush.bf16.msra.mxu0 %v672
    %1033 = vmatpush.bf16.msra.mxu0 %v668
    %1034 = vmatmul.bf16.gmra.mxu0 %v140
    %v1035 = vpop.f32.mrf.mxu0
    %v1036 = vadd.f32 %v276, %v1035
    %v1037 = vpop.f32.mrf.mxu0
    %1038 = vdwg.mxu0
    %1039 = vmatpush.bf16.msra.mxu0 %v728
    %1040 = vmatpush.bf16.msra.mxu0 %v724
    %1041 = vmatpush.bf16.msra.mxu0 %v720
    %1042 = vmatpush.bf16.msra.mxu0 %v716
    %1043 = vmatpush.bf16.msra.mxu0 %v712
    %1044 = vmatpush.bf16.msra.mxu0 %v708
    %1045 = vmatpush.bf16.msra.mxu0 %v704
    %1046 = vmatpush.bf16.msra.mxu0 %v700
    %1047 = vmatmul.bf16.gmra.mxu0 %v141
    %v1048 = vpop.f32.mrf.mxu0
    %v1049 = vadd.f32 %v1036, %v1048
    %v1050 = vpop.f32.mrf.mxu0
    %1051 = vdwg.mxu0
    %1052 = vmatpush.bf16.msra.mxu0 %v760
    %1053 = vmatpush.bf16.msra.mxu0 %v756
    %1054 = vmatpush.bf16.msra.mxu0 %v752
    %1055 = vmatpush.bf16.msra.mxu0 %v748
    %1056 = vmatpush.bf16.msra.mxu0 %v744
    %1057 = vmatpush.bf16.msra.mxu0 %v740
    %1058 = vmatpush.bf16.msra.mxu0 %v736
    %1059 = vmatpush.bf16.msra.mxu0 %v732
    %1060 = vmatmul.bf16.gmra.mxu0 %v142
    %v1061 = vpop.f32.mrf.mxu0
    %v1062 = vadd.f32 %v1049, %v1061
    %v1063 = vpop.f32.mrf.mxu0
    %1064 = vdwg.mxu0
    %1065 = vmatpush.bf16.msra.mxu0 %v792
    %1066 = vmatpush.bf16.msra.mxu0 %v788
    %1067 = vmatpush.bf16.msra.mxu0 %v784
    %1068 = vmatpush.bf16.msra.mxu0 %v780
    %1069 = vmatpush.bf16.msra.mxu0 %v776
    %1070 = vmatpush.bf16.msra.mxu0 %v772
    %1071 = vmatpush.bf16.msra.mxu0 %v768
    %1072 = vmatpush.bf16.msra.mxu0 %v764
    %1073 = vmatmul.bf16.gmra.mxu0 %v143
    %v1074 = vpop.f32.mrf.mxu0
    %v1075 = vadd.f32 %v1062, %v1074
    %v1076 = vpop.f32.mrf.mxu0
    %1077 = vdwg.mxu0
    %1078 = vmatpush.bf16.msra.mxu0 %v697
    %1079 = vmatpush.bf16.msra.mxu0 %v693
    %1080 = vmatpush.bf16.msra.mxu0 %v689
    %1081 = vmatpush.bf16.msra.mxu0 %v685
    %1082 = vmatpush.bf16.msra.mxu0 %v681
    %1083 = vmatpush.bf16.msra.mxu0 %v677
    %1084 = vmatpush.bf16.msra.mxu0 %v673
    %1085 = vmatpush.bf16.msra.mxu0 %v669
    %1086 = vmatmul.bf16.gmra.mxu0 %v140
    %v1087 = vpop.f32.mrf.mxu0
    %v1088 = vadd.f32 %v277, %v1087
    %v1089 = vpop.f32.mrf.mxu0
    %1090 = vdwg.mxu0
    %1091 = vmatpush.bf16.msra.mxu0 %v729
    %1092 = vmatpush.bf16.msra.mxu0 %v725
    %1093 = vmatpush.bf16.msra.mxu0 %v721
    %1094 = vmatpush.bf16.msra.mxu0 %v717
    %1095 = vmatpush.bf16.msra.mxu0 %v713
    %1096 = vmatpush.bf16.msra.mxu0 %v709
    %1097 = vmatpush.bf16.msra.mxu0 %v705
    %1098 = vmatpush.bf16.msra.mxu0 %v701
    %1099 = vmatmul.bf16.gmra.mxu0 %v141
    %v1100 = vpop.f32.mrf.mxu0
    %v1101 = vadd.f32 %v1088, %v1100
    %v1102 = vpop.f32.mrf.mxu0
    %1103 = vdwg.mxu0
    %1104 = vmatpush.bf16.msra.mxu0 %v761
    %1105 = vmatpush.bf16.msra.mxu0 %v757
    %1106 = vmatpush.bf16.msra.mxu0 %v753
    %1107 = vmatpush.bf16.msra.mxu0 %v749
    %1108 = vmatpush.bf16.msra.mxu0 %v745
    %1109 = vmatpush.bf16.msra.mxu0 %v741
    %1110 = vmatpush.bf16.msra.mxu0 %v737
    %1111 = vmatpush.bf16.msra.mxu0 %v733
    %1112 = vmatmul.bf16.gmra.mxu0 %v142
    %v1113 = vpop.f32.mrf.mxu0
    %v1114 = vadd.f32 %v1101, %v1113
    %v1115 = vpop.f32.mrf.mxu0
    %1116 = vdwg.mxu0
    %1117 = vmatpush.bf16.msra.mxu0 %v793
    %1118 = vmatpush.bf16.msra.mxu0 %v789
    %1119 = vmatpush.bf16.msra.mxu0 %v785
    %1120 = vmatpush.bf16.msra.mxu0 %v781
    %1121 = vmatpush.bf16.msra.mxu0 %v777
    %1122 = vmatpush.bf16.msra.mxu0 %v773
    %1123 = vmatpush.bf16.msra.mxu0 %v769
    %1124 = vmatpush.bf16.msra.mxu0 %v765
    %1125 = vmatmul.bf16.gmra.mxu0 %v143
    %v1126 = vpop.f32.mrf.mxu0
    %v1127 = vadd.f32 %v1114, %v1126
    %v1128 = vpop.f32.mrf.mxu0
    %1129 = vdwg.mxu0
    %v1130 = vmax.f32 %v971, 0.0
    %v1131 = vmax.f32 %v1023, 0.0
    %v1132 = vmax.f32 %v1075, 0.0
    %v1133 = vmax.f32 %v1127, 0.0
    %v1134 = vpack.c.bf16 %v1130, %v1130
    %v1135 = vpack.c.bf16 %v1131, %v1131
    %v1136 = vpack.c.bf16 %v1132, %v1132
    %v1137 = vpack.c.bf16 %v1133, %v1133
    %v1138 = vld [vmem:[%s5] sm:$0xf]
    %v1139 = vld [vmem:[%s5 + $0x4] sm:$0xf]
    %v1140 = vld [vmem:[%s5 + $0x8] sm:$0xf]
    %v1141 = vld [vmem:[%s5 + $0xc] sm:$0xf]
    %v1142 = vld [vmem:[%s5 + $0x10] sm:$0xf]
    %v1143 = vld [vmem:[%s5 + $0x14] sm:$0xf]
    %v1144 = vld [vmem:[%s5 + $0x18] sm:$0xf]
    %v1145 = vld [vmem:[%s5 + $0x1c] sm:$0xf]
    %v1146 = vld [vmem:[%s5 + $0x20] sm:$0xf]
    %v1147 = vld [vmem:[%s5 + $0x24] sm:$0xf]
    %v1148 = vld [vmem:[%s5 + $0x28] sm:$0xf]
    %v1149 = vld [vmem:[%s5 + $0x2c] sm:$0xf]
    %v1150 = vld [vmem:[%s5 + $0x30] sm:$0xf]
    %v1151 = vld [vmem:[%s5 + $0x34] sm:$0xf]
    %v1152 = vld [vmem:[%s5 + $0x38] sm:$0xf]
    %v1153 = vld [vmem:[%s5 + $0x3c] sm:$0xf]
    %v1154 = vld [vmem:[%s5 + $0x40] sm:$0xf]
    %v1155 = vld [vmem:[%s5 + $0x44] sm:$0xf]
    %v1156 = vld [vmem:[%s5 + $0x48] sm:$0xf]
    %v1157 = vld [vmem:[%s5 + $0x4c] sm:$0xf]
    %v1158 = vld [vmem:[%s5 + $0x50] sm:$0xf]
    %v1159 = vld [vmem:[%s5 + $0x54] sm:$0xf]
    %v1160 = vld [vmem:[%s5 + $0x58] sm:$0xf]
    %v1161 = vld [vmem:[%s5 + $0x5c] sm:$0xf]
    %v1162 = vld [vmem:[%s5 + $0x60] sm:$0xf]
    %v1163 = vld [vmem:[%s5 + $0x64] sm:$0xf]
    %v1164 = vld [vmem:[%s5 + $0x68] sm:$0xf]
    %v1165 = vld [vmem:[%s5 + $0x6c] sm:$0xf]
    %v1166 = vld [vmem:[%s5 + $0x70] sm:$0xf]
    %v1167 = vld [vmem:[%s5 + $0x74] sm:$0xf]
    %v1168 = vld [vmem:[%s5 + $0x78] sm:$0xf]
    %v1169 = vld [vmem:[%s5 + $0x7c] sm:$0xf]
    %v1170 = vld [vmem:[%s5 + $0x80] sm:$0xf]
    %v1171 = vld [vmem:[%s5 + $0x84] sm:$0xf]
    %v1172 = vld [vmem:[%s5 + $0x88] sm:$0xf]
    %v1173 = vld [vmem:[%s5 + $0x8c] sm:$0xf]
    %v1174 = vld [vmem:[%s5 + $0x90] sm:$0xf]
    %v1175 = vld [vmem:[%s5 + $0x94] sm:$0xf]
    %v1176 = vld [vmem:[%s5 + $0x98] sm:$0xf]
    %v1177 = vld [vmem:[%s5 + $0x9c] sm:$0xf]
    %v1178 = vld [vmem:[%s5 + $0xa0] sm:$0xf]
    %v1179 = vld [vmem:[%s5 + $0xa4] sm:$0xf]
    %v1180 = vld [vmem:[%s5 + $0xa8] sm:$0xf]
    %v1181 = vld [vmem:[%s5 + $0xac] sm:$0xf]
    %v1182 = vld [vmem:[%s5 + $0xb0] sm:$0xf]
    %v1183 = vld [vmem:[%s5 + $0xb4] sm:$0xf]
    %v1184 = vld [vmem:[%s5 + $0xb8] sm:$0xf]
    %v1185 = vld [vmem:[%s5 + $0xbc] sm:$0xf]
    %v1186 = vld [vmem:[%s5 + $0xc0] sm:$0xf]
    %v1187 = vld [vmem:[%s5 + $0xc4] sm:$0xf]
    %v1188 = vld [vmem:[%s5 + $0xc8] sm:$0xf]
    %v1189 = vld [vmem:[%s5 + $0xcc] sm:$0xf]
    %v1190 = vld [vmem:[%s5 + $0xd0] sm:$0xf]
    %v1191 = vld [vmem:[%s5 + $0xd4] sm:$0xf]
    %v1192 = vld [vmem:[%s5 + $0xd8] sm:$0xf]
    %v1193 = vld [vmem:[%s5 + $0xdc] sm:$0xf]
    %v1194 = vld [vmem:[%s5 + $0xe0] sm:$0xf]
    %v1195 = vld [vmem:[%s5 + $0xe4] sm:$0xf]
    %v1196 = vld [vmem:[%s5 + $0xe8] sm:$0xf]
    %v1197 = vld [vmem:[%s5 + $0xec] sm:$0xf]
    %v1198 = vld [vmem:[%s5 + $0xf0] sm:$0xf]
    %v1199 = vld [vmem:[%s5 + $0xf4] sm:$0xf]
    %v1200 = vld [vmem:[%s5 + $0xf8] sm:$0xf]
    %v1201 = vld [vmem:[%s5 + $0xfc] sm:$0xf]
    %v1202 = vld [vmem:[%s6] sm:$0x1]
    %v1204 = vperm.slane %v1202, 0
    %v1270 = vunpack.c.l.b16 %v1138
    %v1271 = vunpack.c.l.b16 %v1139
    %v1272 = vunpack.c.l.b16 %v1140
    %v1273 = vunpack.c.l.b16 %v1141
    %v1274 = vunpack.c.l.b16 %v1142
    %v1275 = vunpack.c.l.b16 %v1143
    %v1276 = vunpack.c.l.b16 %v1144
    %v1277 = vunpack.c.l.b16 %v1145
    %v1278 = vunpack.c.l.b16 %v1146
    %v1279 = vunpack.c.l.b16 %v1147
    %v1280 = vunpack.c.l.b16 %v1148
    %v1281 = vunpack.c.l.b16 %v1149
    %v1282 = vunpack.c.l.b16 %v1150
    %v1283 = vunpack.c.l.b16 %v1151
    %v1284 = vunpack.c.l.b16 %v1152
    %v1285 = vunpack.c.l.b16 %v1153
    %v1286 = vunpack.c.l.b16 %v1154
    %v1287 = vunpack.c.l.b16 %v1155
    %v1288 = vunpack.c.l.b16 %v1156
    %v1289 = vunpack.c.l.b16 %v1157
    %v1290 = vunpack.c.l.b16 %v1158
    %v1291 = vunpack.c.l.b16 %v1159
    %v1292 = vunpack.c.l.b16 %v1160
    %v1293 = vunpack.c.l.b16 %v1161
    %v1294 = vunpack.c.l.b16 %v1162
    %v1295 = vunpack.c.l.b16 %v1163
    %v1296 = vunpack.c.l.b16 %v1164
    %v1297 = vunpack.c.l.b16 %v1165
    %v1298 = vunpack.c.l.b16 %v1166
    %v1299 = vunpack.c.l.b16 %v1167
    %v1300 = vunpack.c.l.b16 %v1168
    %v1301 = vunpack.c.l.b16 %v1169
    %v1302 = vunpack.c.l.b16 %v1170
    %v1303 = vunpack.c.l.b16 %v1171
    %v1304 = vunpack.c.l.b16 %v1172
    %v1305 = vunpack.c.l.b16 %v1173
    %v1306 = vunpack.c.l.b16 %v1174
    %v1307 = vunpack.c.l.b16 %v1175
    %v1308 = vunpack.c.l.b16 %v1176
    %v1309 = vunpack.c.l.b16 %v1177
    %v1310 = vunpack.c.l.b16 %v1178
    %v1311 = vunpack.c.l.b16 %v1179
    %v1312 = vunpack.c.l.b16 %v1180
    %v1313 = vunpack.c.l.b16 %v1181
    %v1314 = vunpack.c.l.b16 %v1182
    %v1315 = vunpack.c.l.b16 %v1183
    %v1316 = vunpack.c.l.b16 %v1184
    %v1317 = vunpack.c.l.b16 %v1185
    %v1318 = vunpack.c.l.b16 %v1186
    %v1319 = vunpack.c.l.b16 %v1187
    %v1320 = vunpack.c.l.b16 %v1188
    %v1321 = vunpack.c.l.b16 %v1189
    %v1322 = vunpack.c.l.b16 %v1190
    %v1323 = vunpack.c.l.b16 %v1191
    %v1324 = vunpack.c.l.b16 %v1192
    %v1325 = vunpack.c.l.b16 %v1193
    %v1326 = vunpack.c.l.b16 %v1194
    %v1327 = vunpack.c.l.b16 %v1195
    %v1328 = vunpack.c.l.b16 %v1196
    %v1329 = vunpack.c.l.b16 %v1197
    %v1330 = vunpack.c.l.b16 %v1198
    %v1331 = vunpack.c.l.b16 %v1199
    %v1332 = vunpack.c.l.b16 %v1200
    %v1333 = vunpack.c.l.b16 %v1201
    %v1334 = vpack.c.b16 %v1271, %v1270
    %v1335 = vpack.c.b16 %v1273, %v1272
    %v1336 = vpack.c.b16 %v1275, %v1274
    %v1337 = vpack.c.b16 %v1277, %v1276
    %v1338 = vpack.c.b16 %v1279, %v1278
    %v1339 = vpack.c.b16 %v1281, %v1280
    %v1340 = vpack.c.b16 %v1283, %v1282
    %v1341 = vpack.c.b16 %v1285, %v1284
    %v1342 = vpack.c.b16 %v1287, %v1286
    %v1343 = vpack.c.b16 %v1289, %v1288
    %v1344 = vpack.c.b16 %v1291, %v1290
    %v1345 = vpack.c.b16 %v1293, %v1292
    %v1346 = vpack.c.b16 %v1295, %v1294
    %v1347 = vpack.c.b16 %v1297, %v1296
    %v1348 = vpack.c.b16 %v1299, %v1298
    %v1349 = vpack.c.b16 %v1301, %v1300
    %v1350 = vpack.c.b16 %v1303, %v1302
    %v1351 = vpack.c.b16 %v1305, %v1304
    %v1352 = vpack.c.b16 %v1307, %v1306
    %v1353 = vpack.c.b16 %v1309, %v1308
    %v1354 = vpack.c.b16 %v1311, %v1310
    %v1355 = vpack.c.b16 %v1313, %v1312
    %v1356 = vpack.c.b16 %v1315, %v1314
    %v1357 = vpack.c.b16 %v1317, %v1316
    %v1358 = vpack.c.b16 %v1319, %v1318
    %v1359 = vpack.c.b16 %v1321, %v1320
    %v1360 = vpack.c.b16 %v1323, %v1322
    %v1361 = vpack.c.b16 %v1325, %v1324
    %v1362 = vpack.c.b16 %v1327, %v1326
    %v1363 = vpack.c.b16 %v1329, %v1328
    %v1364 = vpack.c.b16 %v1331, %v1330
    %v1365 = vpack.c.b16 %v1333, %v1332
    %1398 = vmatpush.bf16.msra.mxu0 %v1341
    %1399 = vmatpush.bf16.msra.mxu0 %v1340
    %1400 = vmatpush.bf16.msra.mxu0 %v1339
    %1401 = vmatpush.bf16.msra.mxu0 %v1338
    %1402 = vmatpush.bf16.msra.mxu0 %v1337
    %1403 = vmatpush.bf16.msra.mxu0 %v1336
    %1404 = vmatpush.bf16.msra.mxu0 %v1335
    %1405 = vmatpush.bf16.msra.mxu0 %v1334
    %1406 = vmatmul.bf16.gmra.mxu0 %v1134
    %v1407 = vpop.f32.mrf.mxu0
    %v1408 = vadd.f32 %v1204, %v1407
    %v1409 = vpop.f32.mrf.mxu0
    %1410 = vdwg.mxu0
    %1411 = vmatpush.bf16.msra.mxu0 %v1349
    %1412 = vmatpush.bf16.msra.mxu0 %v1348
    %1413 = vmatpush.bf16.msra.mxu0 %v1347
    %1414 = vmatpush.bf16.msra.mxu0 %v1346
    %1415 = vmatpush.bf16.msra.mxu0 %v1345
    %1416 = vmatpush.bf16.msra.mxu0 %v1344
    %1417 = vmatpush.bf16.msra.mxu0 %v1343
    %1418 = vmatpush.bf16.msra.mxu0 %v1342
    %1419 = vmatmul.bf16.gmra.mxu0 %v1135
    %v1420 = vpop.f32.mrf.mxu0
    %v1421 = vadd.f32 %v1408, %v1420
    %v1422 = vpop.f32.mrf.mxu0
    %1423 = vdwg.mxu0
    %1424 = vmatpush.bf16.msra.mxu0 %v1357
    %1425 = vmatpush.bf16.msra.mxu0 %v1356
    %1426 = vmatpush.bf16.msra.mxu0 %v1355
    %1427 = vmatpush.bf16.msra.mxu0 %v1354
    %1428 = vmatpush.bf16.msra.mxu0 %v1353
    %1429 = vmatpush.bf16.msra.mxu0 %v1352
    %1430 = vmatpush.bf16.msra.mxu0 %v1351
    %1431 = vmatpush.bf16.msra.mxu0 %v1350
    %1432 = vmatmul.bf16.gmra.mxu0 %v1136
    %v1433 = vpop.f32.mrf.mxu0
    %v1434 = vadd.f32 %v1421, %v1433
    %v1435 = vpop.f32.mrf.mxu0
    %1436 = vdwg.mxu0
    %1437 = vmatpush.bf16.msra.mxu0 %v1365
    %1438 = vmatpush.bf16.msra.mxu0 %v1364
    %1439 = vmatpush.bf16.msra.mxu0 %v1363
    %1440 = vmatpush.bf16.msra.mxu0 %v1362
    %1441 = vmatpush.bf16.msra.mxu0 %v1361
    %1442 = vmatpush.bf16.msra.mxu0 %v1360
    %1443 = vmatpush.bf16.msra.mxu0 %v1359
    %1444 = vmatpush.bf16.msra.mxu0 %v1358
    %1445 = vmatmul.bf16.gmra.mxu0 %v1137
    %v1446 = vpop.f32.mrf.mxu0
    %v1447 = vadd.f32 %v1434, %v1446
    %v1448 = vpop.f32.mrf.mxu0
    %1449 = vdwg.mxu0
    %vm1450 = vcmask 31744
    %v1451 = vsel %vm1450, %v1447, -inf
    %1452 = vmax.xlane.f32.xlu0 %v1451
    %v1453 = vpop.xlane.xlu0 %1452
    %v1454 = vsub.f32 %v1447, %v1453
    %v1455 = vmul.f32 %v1454, 1.442695
    %v1456 = vpow.pop %v1455
    %v1457 = vsel %vm1450, %v1456, 0.0
    %1458 = vadd.xlane.f32.xlu0 %v1457
    %v1459 = vpop.xlane.xlu0 %1458
    %v1460 = vrcp.pop %v1459
    %v1461 = vmul.f32 %v1459, %v1460
    %v1462 = vsub.f32 1.0, %v1461
    %v1463 = vmul.f32 %v1460, %v1462
    %v1464 = vadd.f32 %v1460, %v1463
    %vm1465 = vweird.f32 %v1459
    %vm1466 = vweird.f32 %v1460
    %vm1467 = vmor %vm1465, %vm1466
    %v1468 = vsel %vm1467, %v1460, %v1464
    %v1469 = vand.u32 2147483647, %v1459
    %vm1470 = vcmp.eq.f32.partialorder %v1469, 8.507059e+37
    %v1471 = vand.u32 %v1459, 2147483648
    %v1472 = vor.u32 1.1754944e-38, %v1471
    %v1473 = vsel %vm1470, %v1472, %v1468
    %v1474 = vmul.f32 %v1456, %v1473
    %1475 = vst.msk [vmem:[%s7] sm:$0xff] %vm1450, %v1474
    // Predicated region
    $region34: #{stochastic_policy_forward.1} parent=1 // pred_check
      _
    $region35: #{stochastic_policy_forward.1} parent=1 // pred_check_branch
      %1477 = sbr.rel (0) target = $region37
    $region36: #{stochastic_policy_forward.1} parent=1 // pred_region
      _
    $region37: #{stochastic_policy_forward.1} parent=1 // pred_fallthru
      _
    // Predicated region
    $region38: #{stochastic_policy_forward.1} parent=1 // pred_check
      _
    $region39: #{stochastic_policy_forward.1} parent=1 // pred_check_branch
      %1479 = sbr.rel (0) target = $region41
    $region40: #{stochastic_policy_forward.1} parent=1 // pred_region
      _
    $region41: #{stochastic_policy_forward.1} parent=1 // pred_fallthru
      _
    %1480 = vsyncpa [#allocation3], 1

</llo_original>
